<compile_context>
chip_gen: v7x
topology: tpu7x:2x2x1
jax: 0.10.0
libtpu: 0.0.40
codegen_flags: <defaults>
</compile_context>

<pallas_src>
import functools

import numpy as np
import jax
import jax.numpy as jnp
from jax.experimental import pallas as pl
from jax.experimental.pallas import tpu as pltpu


# ----------------------------------------------------------------------------
# Pallas kernels
# ----------------------------------------------------------------------------

def _linear_kernel(x_ref, w_ref, shift_ref, o_ref, *, act):
    """y = act(x @ w_folded + shift_folded)  (1x1 conv + BN folded, bf16 MXU)."""
    y = jnp.dot(x_ref[...].astype(jnp.bfloat16), w_ref[...],
                preferred_element_type=jnp.float32)
    y = y + shift_ref[...]
    if act == "relu":
        y = jnp.maximum(y, 0.0)
    elif act == "leaky_relu":
        y = jnp.where(y > 0, y, 0.01 * y)
    o_ref[...] = y


def linear_bn_act(x, w, shift, act=None, tile_m=512):
    """Fused (1x1 conv == matmul) + folded-BN + activation, tiled over rows."""
    M, Cin = x.shape
    Cout = w.shape[1]
    TM = min(tile_m, M)                       # TM==M (equals full dim) or 512 (mult. of 8)
    grid = (pl.cdiv(M, TM),)
    return pl.pallas_call(
        functools.partial(_linear_kernel, act=act),
        out_shape=jax.ShapeDtypeStruct((M, Cout), jnp.float32),
        grid=grid,
        in_specs=[pl.BlockSpec((TM, Cin), lambda i: (i, 0)),
                  pl.BlockSpec((Cin, Cout), lambda i: (0, 0)),
                  pl.BlockSpec((1, Cout), lambda i: (0, 0))],
        out_specs=pl.BlockSpec((TM, Cout), lambda i: (i, 0)),
        compiler_params=pltpu.CompilerParams(dimension_semantics=("parallel",)),
    )(x, w, shift.reshape(1, Cout))


def _gcn_kernel(lens_ref, am_ref, x_ref, w_ref, shift_ref, *rest,
                act, has_res, pool):
    """Fused graph-conv layer for one batch element.

    mask invalid rows -> am[b] @ x -> @W' + shift' [+ residual] -> act
    [-> masked max-pool over rows if `pool`].
    """
    if has_res:
        res_ref, o_ref = rest
    else:
        (o_ref,) = rest

    b = pl.program_id(0)
    seq_len = lens_ref[b]
    l_max = x_ref.shape[1]

    row = jax.lax.broadcasted_iota(jnp.int32, (l_max, 1), 0)
    mask = row < seq_len                                     # [Lmax, 1] bool

    x = jnp.where(mask, x_ref[0], 0.0)                       # zero padded rows
    xa = jnp.dot(am_ref[0], x, preferred_element_type=jnp.float32)
    y = jnp.dot(xa.astype(jnp.bfloat16), w_ref[...],
                preferred_element_type=jnp.float32)
    y = y + shift_ref[...]
    if has_res:
        y = y + res_ref[0]
    if act == "relu":
        y = jnp.maximum(y, 0.0)
    elif act == "leaky_relu":
        y = jnp.where(y > 0, y, 0.01 * y)

    if pool:
        y = jnp.where(mask, y, -jnp.inf)
        o_ref[0] = jnp.max(y, axis=0, keepdims=True)
    else:
        o_ref[0] = y


def graph_conv_fused(x_pad, am, lens, w, shift, act=None, residual=None,
                     pool=False):
    """One pallas_call per graph-conv layer; grid over batch (parallel)."""
    B, Lmax, Cin = x_pad.shape
    Cout = w.shape[1]
    args = [am, x_pad, w, shift.reshape(1, Cout)]
    in_specs = [
        pl.BlockSpec((1, Lmax, Lmax), lambda b, lens_ref: (b, 0, 0)),
        pl.BlockSpec((1, Lmax, Cin), lambda b, lens_ref: (b, 0, 0)),
        pl.BlockSpec((Cin, Cout), lambda b, lens_ref: (0, 0)),
        pl.BlockSpec((1, Cout), lambda b, lens_ref: (0, 0)),
    ]
    if residual is not None:
        args.append(residual)
        in_specs.append(pl.BlockSpec((1, Lmax, Cout),
                                     lambda b, lens_ref: (b, 0, 0)))
    out_rows = 1 if pool else Lmax
    return pl.pallas_call(
        functools.partial(_gcn_kernel, act=act,
                          has_res=residual is not None, pool=pool),
        out_shape=jax.ShapeDtypeStruct((B, out_rows, Cout), jnp.float32),
        grid_spec=pltpu.PrefetchScalarGridSpec(
            num_scalar_prefetch=1,
            grid=(B,),
            in_specs=in_specs,
            out_specs=pl.BlockSpec((1, out_rows, Cout),
                                   lambda b, lens_ref: (b, 0, 0)),
        ),
        compiler_params=pltpu.CompilerParams(dimension_semantics=("parallel",)),
    )(lens, *args)


def _bilstm_kernel(xp_ref, whh_ref, h_out_ref, h_sc, c_sc):
    """Both LSTM directions in one kernel; in-kernel time loop.

    xp_ref:  [T, 2, B, 4H]   (x @ W_ih^T + b_ih + b_hh, dir-stacked)
    whh_ref: [2, H, 4H]      (per-direction recurrent weights)
    h_out:   [T, 2, B, H]
    """
    T = xp_ref.shape[0]
    H = whh_ref.shape[1]
    h_sc[...] = jnp.zeros_like(h_sc)
    c_sc[...] = jnp.zeros_like(c_sc)

    def step(t, carry):
        gates = xp_ref[t] + jnp.einsum(
            "dbh,dhg->dbg", h_sc[...], whh_ref[...],
            preferred_element_type=jnp.float32)
        i = jax.nn.sigmoid(gates[..., 0:H])
        f = jax.nn.sigmoid(gates[..., H:2 * H])
        g = jnp.tanh(gates[..., 2 * H:3 * H])
        o = jax.nn.sigmoid(gates[..., 3 * H:4 * H])
        c = f * c_sc[...] + i * g
        h = o * jnp.tanh(c)
        c_sc[...] = c
        h_sc[...] = h
        h_out_ref[t] = h
        return carry

    # TODO(synk): for very long sequences, tile T via a grid axis instead of unrolling.
    jax.lax.fori_loop(0, T, step, 0, unroll=(T <= 32))


def bilstm_recurrence(xproj, whh_stacked):
    """xproj: [T, 2, B, 4H], whh_stacked: [2, H, 4H] -> hidden [T, 2, B, H]."""
    T, D2, B, G = xproj.shape
    H = G // 4
    vspec = pl.BlockSpec(memory_space=pltpu.MemorySpace.VMEM)
    return pl.pallas_call(
        _bilstm_kernel,
        out_shape=jax.ShapeDtypeStruct((T, D2, B, H), jnp.float32),
        in_specs=[vspec, vspec],
        out_specs=vspec,
        scratch_shapes=[pltpu.VMEM((D2, B, H), jnp.float32),
                        pltpu.VMEM((D2, B, H), jnp.float32)],
    )(xproj, whh_stacked)


# ----------------------------------------------------------------------------
# Parameters (BatchNorm folded, weights stored bf16 for the MXU)
# ----------------------------------------------------------------------------

def fold_linear(key, cin, cout, with_bn=True, pad_to=None):
    k = jax.random.split(key, 6)
    w = jax.random.normal(k[0], (cin, cout), jnp.float32) / np.sqrt(cin)
    b = 0.1 * jax.random.normal(k[1], (cout,), jnp.float32)
    if with_bn:
        gamma = 1.0 + 0.1 * jax.random.normal(k[2], (cout,), jnp.float32)
        beta = 0.1 * jax.random.normal(k[3], (cout,), jnp.float32)
        mean = 0.1 * jax.random.normal(k[4], (cout,), jnp.float32)
        var = 0.5 + jax.random.uniform(k[5], (cout,), jnp.float32)
        scale = gamma / jnp.sqrt(var + 1e-5)
        shift = beta - mean * scale
    else:
        scale = jnp.ones((cout,), jnp.float32)
        shift = jnp.zeros((cout,), jnp.float32)
    # Eval-mode BN folding: y = x @ (w*scale) + (b*scale + shift)
    wf = w * scale[None, :]
    sf = b * scale + shift
    if pad_to is not None and pad_to > cout:
        wf = jnp.pad(wf, ((0, 0), (0, pad_to - cout)))
        sf = jnp.pad(sf, (0, pad_to - cout))
    return dict(w=wf.astype(jnp.bfloat16), shift=sf.astype(jnp.float32))


def make_lstm_params(key, in_dim, hidden):
    ks = jax.random.split(key, 4)
    std = 1.0 / np.sqrt(hidden)
    wih = jax.random.uniform(ks[0], (4 * hidden, in_dim), jnp.float32, -std, std)
    whh = jax.random.uniform(ks[1], (4 * hidden, hidden), jnp.float32, -std, std)
    bih = jax.random.uniform(ks[2], (4 * hidden,), jnp.float32, -std, std)
    bhh = jax.random.uniform(ks[3], (4 * hidden,), jnp.float32, -std, std)
    return dict(w_ih=wih.T.astype(jnp.bfloat16),          # [in_dim, 4H]
                shift=(bih + bhh).astype(jnp.float32),     # [4H]
                w_hh=whh.T.astype(jnp.float32))            # [H, 4H] (f32 recurrence)


def make_encoder_params(key, n_ref_points):
    F = n_ref_points + 1
    ks = jax.random.split(key, 12)
    return dict(
        mlp1=fold_linear(ks[0], F, 64),
        lstm_f=make_lstm_params(ks[1], 64, 64),
        lstm_b=make_lstm_params(ks[2], 64, 64),
        mlp2=fold_linear(ks[3], 128, 256),
        gcl=fold_linear(ks[4], 256, 256),
        gcrb1_l1=fold_linear(ks[5], 256, 256),
        gcrb1_l2=fold_linear(ks[6], 256, 256),
        gcrb2_lin=fold_linear(ks[7], 256, 512),
        gcrb2_l1=fold_linear(ks[8], 256, 256),
        gcrb2_l2=fold_linear(ks[9], 256, 512),
        fc1=fold_linear(ks[10], 512, 512),
        fc2=fold_linear(ks[11], 512, 400, with_bn=False, pad_to=512),
        fc2_out=400,
    )


# ----------------------------------------------------------------------------
# Encoder forward
# ----------------------------------------------------------------------------

def encoder_forward(params, x_o, ld, am):
    B, Lmax, F = x_o.shape
    H = 64
    lens = jnp.asarray(np.asarray(ld, dtype=np.int32))

    # reverse-within-length indices + validity mask (backward LSTM direction)
    rev_np = np.zeros((B, Lmax), dtype=np.int32)
    mask_np = np.zeros((B, Lmax), dtype=np.float32)
    for b, l in enumerate(ld):
        rev_np[b, :l] = np.arange(l - 1, -1, -1)
        mask_np[b, :l] = 1.0
    rev_idx = jnp.asarray(rev_np)
    valid = jnp.asarray(mask_np)

    # ---- rnn_module: mlp1 ----
    p = params["mlp1"]
    x2 = linear_bn_act(x_o.reshape(B * Lmax, F), p["w"], p["shift"],
                       act="leaky_relu").reshape(B, Lmax, H)

    # ---- biLSTM (both directions in one recurrence kernel) ----
    rev3 = jnp.broadcast_to(rev_idx[:, :, None], x2.shape)
    x2_rev = jnp.take_along_axis(x2, rev3, axis=1) * valid[:, :, None]

    pf, pb = params["lstm_f"], params["lstm_b"]
    xpf = linear_bn_act(x2.reshape(B * Lmax, H), pf["w_ih"], pf["shift"])
    xpb = linear_bn_act(x2_rev.reshape(B * Lmax, H), pb["w_ih"], pb["shift"])
    xp = jnp.stack([xpf.reshape(B, Lmax, 4 * H),
                    xpb.reshape(B, Lmax, 4 * H)], axis=0)   # [2, B, T, 4H]
    xp = xp.transpose(2, 0, 1, 3)                           # [T, 2, B, 4H]
    whh_stacked = jnp.stack([pf["w_hh"], pb["w_hh"]], axis=0)  # [2, H, 4H]

    h_out = bilstm_recurrence(xp, whh_stacked)               # [T, 2, B, H]
    hf = h_out[:, 0].transpose(1, 0, 2)                      # [B, T, H]
    hb_rev = h_out[:, 1].transpose(1, 0, 2)                  # [B, T, H]
    hb = jnp.take_along_axis(
        hb_rev, jnp.broadcast_to(rev_idx[:, :, None], hb_rev.shape), axis=1)
    h = jnp.concatenate([hf, hb], axis=-1)                   # [B, T, 128]

    # ---- mlp2 ----
    p = params["mlp2"]
    x4 = linear_bn_act(h.reshape(B * Lmax, 2 * H), p["w"], p["shift"],
                       act="leaky_relu").reshape(B, Lmax, 256)

    # ---- GCN stack (fused agg + linear + BN + act per layer, padded layout) ----
    p = params["gcl"]
    x5 = graph_conv_fused(x4, am, lens, p["w"], p["shift"], act="leaky_relu")

    p1, p2 = params["gcrb1_l1"], params["gcrb1_l2"]
    xt = graph_conv_fused(x5, am, lens, p1["w"], p1["shift"], act="relu")
    x6 = graph_conv_fused(xt, am, lens, p2["w"], p2["shift"],
                          act="leaky_relu", residual=x5)

    p_lin, p1, p2 = params["gcrb2_lin"], params["gcrb2_l1"], params["gcrb2_l2"]
    res2 = linear_bn_act(x6.reshape(B * Lmax, 256), p_lin["w"],
                         p_lin["shift"]).reshape(B, Lmax, 512)
    xt = graph_conv_fused(x6, am, lens, p1["w"], p1["shift"], act="relu")
    # Last GCN layer fuses residual add + leaky_relu + per-graph masked max pool.
    xm = graph_conv_fused(xt, am, lens, p2["w"], p2["shift"],
                          act="leaky_relu", residual=res2, pool=True)
    xm = xm.reshape(B, 512)

    # ---- fc head ----
    p = params["fc1"]
    y = linear_bn_act(xm, p["w"], p["shift"], act="leaky_relu")
    p = params["fc2"]
    y = linear_bn_act(y, p["w"], p["shift"])[:, :params["fc2_out"]]
    return y                                                  # [B, 400]


# ----------------------------------------------------------------------------
# main
# ----------------------------------------------------------------------------

if __name__ == "__main__":
    key = jax.random.PRNGKey(0)
    n_ref_points = 3
    B, Lmax = 2, 8
    ld = [8, 5]                     # valid sequence lengths per batch element

    kp, kx, ka = jax.random.split(key, 3)
    params = make_encoder_params(kp, n_ref_points)
    x_o = jax.random.normal(kx, (B, Lmax, n_ref_points + 1), jnp.float32)
    am = jax.random.uniform(ka, (B, Lmax, Lmax), jnp.float32)

    out = encoder_forward(params, x_o, ld, am)
    out = jax.block_until_ready(out)
    assert out.shape == (B, 400), out.shape
    assert bool(jnp.all(jnp.isfinite(out)))
    print("KERNEL_OK")
</pallas_src>

<mosaic_0001>
module attributes {stable_mosaic.version = 11 : i64} {
  func.func @_linear_kernel(%arg0: i32, %arg1: memref<16x4xf32, #tpu.memory_space<vmem>>, %arg2: memref<4x64xbf16, #tpu.memory_space<vmem>>, %arg3: memref<1x64xf32, #tpu.memory_space<vmem>>, %arg4: memref<16x64xf32, #tpu.memory_space<vmem>>) attributes {dimension_semantics = [#tpu.dimension_semantics<parallel>], iteration_bounds = array<i64: 1>, scalar_prefetch = 0 : i64, scratch_operands = 0 : i64, tpu.core_type = #tpu.core_type<tc>, window_params = [{transform_indices = @transform_0, window_bounds = array<i64: 16, 4>}, {pipeline_mode = #tpu.pipeline_mode<synchronous>, transform_indices = @transform_1, window_bounds = array<i64: 4, 64>}, {pipeline_mode = #tpu.pipeline_mode<synchronous>, transform_indices = @transform_2, window_bounds = array<i64: 1, 64>}, {transform_indices = @transform_3, window_bounds = array<i64: 16, 64>}]} {
    %c0 = arith.constant 0 : index
    %c0_0 = arith.constant 0 : index
    %0 = vector.load %arg1[%c0, %c0_0] : memref<16x4xf32, #tpu.memory_space<vmem>>, vector<16x4xf32>
    %1 = arith.truncf %0 : vector<16x4xf32> to vector<16x4xbf16>
    %c0_1 = arith.constant 0 : index
    %c0_2 = arith.constant 0 : index
    %2 = vector.load %arg2[%c0_1, %c0_2] : memref<4x64xbf16, #tpu.memory_space<vmem>>, vector<4x64xbf16>
    %cst = arith.constant dense<0.000000e+00> : vector<16x64xf32>
    %3 = tpu.matmul %1, %2, %cst {dimension_numbers = #tpu.dot_dimension_numbers<[1], [0], [0], [1], [0, 0, 1, 1], [], []>} : vector<16x4xbf16>, vector<4x64xbf16>, vector<16x64xf32> -> vector<16x64xf32>
    %c0_3 = arith.constant 0 : index
    %c0_4 = arith.constant 0 : index
    %4 = vector.load %arg3[%c0_3, %c0_4] : memref<1x64xf32, #tpu.memory_space<vmem>>, vector<1x64xf32>
    %5 = vector.broadcast %4 : vector<1x64xf32> to vector<16x64xf32>
    %6 = arith.addf %3, %5 : vector<16x64xf32>
    %cst_5 = arith.constant 0.000000e+00 : f32
    %7 = vector.broadcast %cst_5 : f32 to vector<16x64xf32>
    %8 = arith.cmpf ogt, %6, %7 : vector<16x64xf32>
    %cst_6 = arith.constant 0.00999999977 : f32
    %9 = vector.broadcast %cst_6 : f32 to vector<16x64xf32>
    %10 = arith.mulf %9, %6 : vector<16x64xf32>
    %11 = arith.select %8, %6, %10 : vector<16x64xi1>, vector<16x64xf32>
    %c0_7 = arith.constant 0 : index
    %c0_8 = arith.constant 0 : index
    %12 = vector.load %arg4[%c0_7, %c0_8] : memref<16x64xf32, #tpu.memory_space<vmem>>, vector<16x64xf32>
    tpu.vector_store %arg4[%c0_7, %c0_8], %11 {strides = array<i32>} : memref<16x64xf32, #tpu.memory_space<vmem>>, vector<16x64xf32>,
    return
  }
  func.func @transform_0(%arg0: i32) -> (i32, i32) {
    %c0_i32 = arith.constant 0 : i32
    %c0_i32_0 = arith.constant 0 : i32
    return %arg0, %c0_i32 : i32, i32
  }
  func.func @transform_1(%arg0: i32) -> (i32, i32) {
    %c0_i32 = arith.constant 0 : i32
    %c0_i32_0 = arith.constant 0 : i32
    %c0_i32_1 = arith.constant 0 : i32
    return %c0_i32, %c0_i32_0 : i32, i32
  }
  func.func @transform_2(%arg0: i32) -> (i32, i32) {
    %c0_i32 = arith.constant 0 : i32
    %c0_i32_0 = arith.constant 0 : i32
    %c0_i32_1 = arith.constant 0 : i32
    return %c0_i32, %c0_i32_0 : i32, i32
  }
  func.func @transform_3(%arg0: i32) -> (i32, i32) {
    %c0_i32 = arith.constant 0 : i32
    %c0_i32_0 = arith.constant 0 : i32
    return %arg0, %c0_i32 : i32, i32
  }
}

</mosaic_0001>

<llo_original>
// kernel: tpu_custom_call.1
$region0: #{tpu_custom_call.1}
  #allocation0 [shape = 'u32[]', space=smem, size = 0x4, offset = 0x4, fixed_abs, tag = 'smem constant byte address 0x4 - core index']
  #allocation1 [shape = 'u32[144,128]{1,0:T(1,128)}', space=vmem, size = 0x12000, scoped, tag = 'internal scratch']
  %s0 = inlined_call_operand.vmem [shape: f32[16,4], index: 0, kind: input, shape index: {}]
  %s1 = inlined_call_operand.vmem [shape: bf16[4,64], index: 1, kind: input, shape index: {}]
  %s2 = inlined_call_operand.vmem [shape: f32[1,64], index: 2, kind: input, shape index: {}]
  %s3 = inlined_call_operand.hbm [shape: f32[16,64], index: 3, kind: output, shape index: {}]
  %s4 = sld [smem:[#allocation0]]
  $region22: #{tpu_custom_call.1} parent=0
    _
  %s6 = ssub.s32 1, %s4
  %s7 = scalar_select 0, %s6, %s4
  $region1: #{tpu_custom_call.1} parent=0
    #allocation2 [shape = 'u8[8192]{0}', space=vmem, size = 0x2000, scoped, tag = 'output window, operand 0, single buffered']
    #allocation3 [shape = 's32[1]{0}', space=sflag, size = 0x4, scoped, tag = 'scoped memory for tpu_custom_call.1']
    %8 = vsyncpa [#allocation3], 0
    // Predicated region
    $region2: #{tpu_custom_call.1} parent=1 // pred_check
      _
    $region3: #{tpu_custom_call.1} parent=1 // pred_check_branch
      %10 = sbr.rel (0) target = $region5
    $region4: #{tpu_custom_call.1} parent=1 // pred_region
      _
    $region5: #{tpu_custom_call.1} parent=1 // pred_fallthru
      _
    // Predicated region
    $region6: #{tpu_custom_call.1} parent=1 // pred_check
      _
    $region7: #{tpu_custom_call.1} parent=1 // pred_check_branch
      %12 = sbr.rel (0) target = $region9
    $region8: #{tpu_custom_call.1} parent=1 // pred_region
      _
    $region9: #{tpu_custom_call.1} parent=1 // pred_fallthru
      _
    // Predicated region
    $region10: #{tpu_custom_call.1} parent=1 // pred_check
      _
    $region11: #{tpu_custom_call.1} parent=1 // pred_check_branch
      %14 = sbr.rel (0) target = $region13
    $region12: #{tpu_custom_call.1} parent=1 // pred_region
      _
    $region13: #{tpu_custom_call.1} parent=1 // pred_fallthru
      _
    %v16 = vld [vmem:[%s0] sm:$0xff]
    %v17 = vld [vmem:[%s0 + $0x8] sm:$0xff]
    %v18 = vpack.c.bf16 %v17, %v16
    %v19 = vld [vmem:[%s1] sm:$0x3]
    %v20 = vld [vmem:[%s2] sm:$0x1]
    %v22 = vlaneseq
    %v23 = vshrl.u32 %v22, 7
    %v24 = vsub.s32 0, %v23
    %v25 = vrot.slane %v20, %v24
    %vm27 = vcmask 31744
    %v29 = vsel %vm27, %v18, 0
    %vm31 = vcmask 1041408
    %v33 = vsel %vm31, %v19, 0
    %35 = vmatprep.subr.bf16.mxu0 0
    %36 = vmatpush1.bf16.msra.mxu0 %v33
    %37 = vmatprep.subr.bf16.mxu0 0
    %38 = vmatpush1.bf16.msra.mxu0 0
    %39 = vmatprep.subr.bf16.mxu0 0
    %40 = vmatpush1.bf16.msra.mxu0 0
    %41 = vmatprep.subr.bf16.mxu0 0
    %42 = vmatpush1.bf16.msra.mxu0 0
    %43 = vmatprep.subr.bf16.mxu0 0
    %44 = vmatpush1.bf16.msra.mxu0 0
    %45 = vmatprep.subr.bf16.mxu0 0
    %46 = vmatpush1.bf16.msra.mxu0 0
    %47 = vmatprep.subr.bf16.mxu0 0
    %48 = vmatpush1.bf16.msra.mxu0 0
    %49 = vmatprep.subr.bf16.mxu0 0
    %50 = vmatpush1.bf16.msra.mxu0 0
    %51 = vmatprep.subr.bf16.mxu0 0
    %52 = vmatpush1.bf16.msra.mxu0 0
    %53 = vmatprep.subr.bf16.mxu0 0
    %54 = vmatpush1.bf16.msra.mxu0 0
    %55 = vmatprep.subr.bf16.mxu0 0
    %56 = vmatpush1.bf16.msra.mxu0 0
    %57 = vmatprep.subr.bf16.mxu0 0
    %58 = vmatpush1.bf16.msra.mxu0 0
    %59 = vmatprep.subr.bf16.mxu0 0
    %60 = vmatpush1.bf16.msra.mxu0 0
    %61 = vmatprep.subr.bf16.mxu0 0
    %62 = vmatpush1.bf16.msra.mxu0 0
    %63 = vmatprep.subr.bf16.mxu0 0
    %64 = vmatpush1.bf16.msra.mxu0 0
    %65 = vmatprep.subr.bf16.mxu0 0
    %66 = vmatpush1.bf16.msra.mxu0 0
    %67 = vmatprep.mubr.bf16.mxu0 0
    %68 = vmatmul.mubr.bf16.gmra.mrb[0].mxu0 %v29
    %v69 = vpop.f32.mrb[0].mxu0
    %v70 = vadd.f32 %v25, %v69
    %v71 = vpop.f32.mrb[0].mxu0
    %v72 = vpop.f32.mrb[0].mxu0
    %v73 = vadd.f32 %v25, %v72
    %v74 = vpop.f32.mrb[0].mxu0
    %75 = vdwg.mxu0
    %vm76 = vcmp.gt.f32.partialorder %v70, 0.0
    %vm77 = vcmp.gt.f32.partialorder %v73, 0.0
    %v78 = vmul.f32 %v70, 0.01
    %v79 = vmul.f32 %v73, 0.01
    %v80 = vsel %vm76, %v70, %v78
    %v81 = vsel %vm77, %v73, %v79
    %vm82 = vcmask 523264
    %83 = vst.msk [vmem:[#allocation2] sm:$0xff] %vm82, %v80
    %84 = vst.msk [vmem:[#allocation2 + $0x8] sm:$0xff] %vm82, %v81
    // Predicated region
    $region14: #{tpu_custom_call.1} parent=1 // pred_check
      _
    $region15: #{tpu_custom_call.1} parent=1 // pred_check_branch
      %86 = sbr.rel (0) target = $region17
    $region16: #{tpu_custom_call.1} parent=1 // pred_region
      %s88 = ssub.s32 256, 256
      %89 = vsyncadd [#allocation3], %s88
      %s90 = sshll.u32 [#allocation2], 4
      %s91 = int_to_ptr.vmem [resolvable:$true] %s90
      %96 = dma.vmem_to_hbm [thread:$0]  %s91, 256, %s3, [#allocation3], 128, 128, 8
    $region17: #{tpu_custom_call.1} parent=1 // pred_fallthru
      _
    // Predicated region
    $region18: #{tpu_custom_call.1} parent=1 // pred_check
      _
    $region19: #{tpu_custom_call.1} parent=1 // pred_check_branch
      %98 = sbr.rel (0) target = $region21
    $region20: #{tpu_custom_call.1} parent=1 // pred_region
      %99 = dma.done [#allocation3], 256
    $region21: #{tpu_custom_call.1} parent=1 // pred_fallthru
      _
    %100 = vsyncpa [#allocation3], 1

</llo_original>
